<compile_context>
chip_gen: v7x
topology: tpu7x:2x2x1
jax: 0.10.0
libtpu: 0.0.40
codegen_flags: <defaults>
</compile_context>

<pallas_src>
import functools

import jax
import jax.numpy as jnp
from jax.experimental import pallas as pl
from jax.experimental.pallas import tpu as pltpu


_OUT_SUBLANES = 8
_OUT_LANES = 128


def _label_smoothing_kernel(x_ref, t_ref, o_ref, *, confidence, smoothing,
                            batch, block_b):
    i = pl.program_id(0)

    x = x_ref[...].astype(jnp.float32)          # (TB, C), upcast in-kernel only
    t = t_ref[...]                              # (TB, 1) int32
    tb, c = x.shape

    # Mask rows of a partial last tile (and any garbage they may contain).
    row = jax.lax.broadcasted_iota(jnp.int32, (tb, 1), 0)
    valid = (i * block_b + row) < batch                       # (TB, 1) bool
    x = jnp.where(valid, x, 0.0)

    # logsumexp over classes (numerically stable).
    m = jnp.max(x, axis=-1, keepdims=True)                    # (TB, 1)
    sum_exp = jnp.sum(jnp.exp(x - m), axis=-1, keepdims=True) # (TB, 1)
    lse = m + jnp.log(sum_exp)                                # (TB, 1)

    # x[target] via masked pick (no gather needed on TPU).
    col = jax.lax.broadcasted_iota(jnp.int32, (tb, c), 1)
    x_tgt = jnp.sum(jnp.where(col == t, x, 0.0), axis=-1, keepdims=True)

    mean_x = jnp.sum(x, axis=-1, keepdims=True) * (1.0 / c)   # (TB, 1)

    # per-row: confidence*(lse - x[t]) + smoothing*(lse - mean_x)
    loss = lse - confidence * x_tgt - smoothing * mean_x      # (TB, 1)
    loss = jnp.where(valid, loss, 0.0)

    partial = jnp.sum(loss)                                   # tile partial sum
    # Lane-dense (8, 128) output block per tile (unmasked vst), partial splat.
    o_ref[...] = jnp.broadcast_to(partial, (_OUT_SUBLANES, _OUT_LANES))


def _pick_block_b(batch, num_classes, itemsize, budget_bytes=8 * 1024 * 1024):
    """Largest batch tile whose x block fits ~budget_bytes (BlockSpec
    double-buffers it -> ~2x this in VMEM)."""
    rows = max(1, budget_bytes // max(1, num_classes * itemsize))
    if rows >= batch:
        return batch                      # single tile covering the whole batch
    tb = max(8, (rows // 8) * 8)          # keep sublane (8) alignment
    return min(tb, batch)


def label_smoothing_loss(x, target, smoothing=0.1, block_b=None):
    """Pallas TPU implementation of LabelSmoothing.forward(x, target).

    x:      (B, C) logits in their native float dtype (f32 or bf16).
    target: (B,) integer class indices.
    """
    batch, num_classes = x.shape
    confidence = 1.0 - smoothing
    t2d = target.astype(jnp.int32).reshape(batch, 1)

    if block_b is None:
        block_b = _pick_block_b(batch, num_classes, x.dtype.itemsize)
    block_b = min(block_b, batch)
    num_tiles = pl.cdiv(batch, block_b)

    kernel = functools.partial(
        _label_smoothing_kernel,
        confidence=confidence, smoothing=smoothing,
        batch=batch, block_b=block_b)

    partials = pl.pallas_call(
        kernel,
        out_shape=jax.ShapeDtypeStruct(
            (num_tiles * _OUT_SUBLANES, _OUT_LANES), jnp.float32),
        grid=(num_tiles,),
        in_specs=[
            pl.BlockSpec((block_b, num_classes), lambda i: (i, 0)),
            pl.BlockSpec((block_b, 1), lambda i: (i, 0)),
        ],
        out_specs=pl.BlockSpec((_OUT_SUBLANES, _OUT_LANES), lambda i: (i, 0)),
        compiler_params=pltpu.CompilerParams(
            dimension_semantics=("parallel",),
            vmem_limit_bytes=32 * 1024 * 1024,
        ),
    )(x, t2d)

    # Each tile wrote its partial sum splat over an (8, 128) block; take one
    # representative value per tile and finish the mean over the true batch.
    return jnp.sum(partials[::_OUT_SUBLANES, 0]) / batch


def _reference(x, target, smoothing=0.1):
    confidence = 1.0 - smoothing
    logprobs = jax.nn.log_softmax(x.astype(jnp.float32), axis=-1)
    nll = -jnp.take_along_axis(
        logprobs, target[:, None].astype(jnp.int32), axis=-1)[:, 0]
    smooth = -jnp.mean(logprobs, axis=-1)
    return jnp.mean(confidence * nll + smoothing * smooth)


if __name__ == "__main__":
    key = jax.random.PRNGKey(0)

    # Case 1: small f32, single tile.
    k1, k2, k3, k4 = jax.random.split(key, 4)
    B1, C1 = 8, 32
    x1 = jax.random.normal(k1, (B1, C1), dtype=jnp.float32)
    t1 = jax.random.randint(k2, (B1,), 0, C1, dtype=jnp.int32)
    out1 = jax.block_until_ready(label_smoothing_loss(x1, t1, smoothing=0.1))
    ref1 = _reference(x1, t1, smoothing=0.1)
    assert jnp.allclose(out1, ref1, atol=1e-5, rtol=1e-5), (out1, ref1)

    # Case 2: bf16 logits, multiple batch tiles incl. a partial last tile.
    B2, C2 = 20, 128
    x2 = jax.random.normal(k3, (B2, C2), dtype=jnp.float32).astype(jnp.bfloat16)
    t2 = jax.random.randint(k4, (B2,), 0, C2, dtype=jnp.int32)
    out2 = jax.block_until_ready(
        label_smoothing_loss(x2, t2, smoothing=0.1, block_b=8))
    ref2 = _reference(x2, t2, smoothing=0.1)   # reference on f32-upcast of bf16
    assert jnp.allclose(out2, ref2, atol=1e-4, rtol=1e-4), (out2, ref2)

    print("KERNEL_OK")
</pallas_src>

<mosaic_0001>
module attributes {stable_mosaic.version = 11 : i64} {
  func.func @_label_smoothing_kernel(%arg0: i32, %arg1: memref<8x32xf32, #tpu.memory_space<vmem>>, %arg2: memref<8x1xi32, #tpu.memory_space<vmem>>, %arg3: memref<8x128xf32, #tpu.memory_space<vmem>>) attributes {dimension_semantics = [#tpu.dimension_semantics<parallel>], iteration_bounds = array<i64: 1>, scalar_prefetch = 0 : i64, scratch_operands = 0 : i64, tpu.core_type = #tpu.core_type<tc>, window_params = [{transform_indices = @transform_0, window_bounds = array<i64: 8, 32>}, {transform_indices = @transform_1, window_bounds = array<i64: 8, 1>}, {transform_indices = @transform_2, window_bounds = array<i64: 8, 128>}]} {
    %c0 = arith.constant 0 : index
    %c0_0 = arith.constant 0 : index
    %0 = vector.load %arg1[%c0, %c0_0] : memref<8x32xf32, #tpu.memory_space<vmem>>, vector<8x32xf32>
    %c0_1 = arith.constant 0 : index
    %c0_2 = arith.constant 0 : index
    %1 = vector.load %arg2[%c0_1, %c0_2] : memref<8x1xi32, #tpu.memory_space<vmem>>, vector<8x1xi32>
    %2 = tpu.iota {dimensions = array<i32: 0>} : vector<8x1xi32>
    %c8_i32 = arith.constant 8 : i32
    %3 = arith.muli %arg0, %c8_i32 : i32
    %4 = vector.broadcast %3 : i32 to vector<8x1xi32>
    %5 = arith.addi %4, %2 : vector<8x1xi32>
    %c8_i32_3 = arith.constant 8 : i32
    %6 = vector.broadcast %c8_i32_3 : i32 to vector<8x1xi32>
    %7 = arith.cmpi slt, %5, %6 : vector<8x1xi32>
    %cst = arith.constant 0.000000e+00 : f32
    %8 = vector.shape_cast %7 : vector<8x1xi1> to vector<8x1xi1>
    %9 = vector.broadcast %8 : vector<8x1xi1> to vector<8x32xi1>
    %10 = vector.broadcast %cst : f32 to vector<8x32xf32>
    %11 = arith.select %9, %0, %10 : vector<8x32xi1>, vector<8x32xf32>
    %cst_4 = arith.constant dense<0xFF800000> : vector<8xf32>
    %12 = vector.multi_reduction <maximumf>, %11, %cst_4 [1] : vector<8x32xf32> to vector<8xf32>
    %13 = vector.shape_cast %12 : vector<8xf32> to vector<8x1xf32>
    %14 = vector.broadcast %13 : vector<8x1xf32> to vector<8x32xf32>
    %15 = arith.subf %11, %14 : vector<8x32xf32>
    %16 = math.exp %15 : vector<8x32xf32>
    %cst_5 = arith.constant dense<0.000000e+00> : vector<8xf32>
    %17 = vector.multi_reduction <add>, %16, %cst_5 [1] : vector<8x32xf32> to vector<8xf32>
    %18 = vector.shape_cast %17 : vector<8xf32> to vector<8x1xf32>
    %19 = math.log %18 : vector<8x1xf32>
    %20 = arith.addf %13, %19 : vector<8x1xf32>
    %21 = tpu.iota {dimensions = array<i32: 1>} : vector<8x32xi32>
    %22 = vector.broadcast %1 : vector<8x1xi32> to vector<8x32xi32>
    %23 = arith.cmpi eq, %21, %22 : vector<8x32xi32>
    %cst_6 = arith.constant 0.000000e+00 : f32
    %24 = vector.broadcast %cst_6 : f32 to vector<8x32xf32>
    %25 = arith.select %23, %11, %24 : vector<8x32xi1>, vector<8x32xf32>
    %cst_7 = arith.constant dense<0.000000e+00> : vector<8xf32>
    %26 = vector.multi_reduction <add>, %25, %cst_7 [1] : vector<8x32xf32> to vector<8xf32>
    %27 = vector.shape_cast %26 : vector<8xf32> to vector<8x1xf32>
    %cst_8 = arith.constant dense<0.000000e+00> : vector<8xf32>
    %28 = vector.multi_reduction <add>, %11, %cst_8 [1] : vector<8x32xf32> to vector<8xf32>
    %29 = vector.shape_cast %28 : vector<8xf32> to vector<8x1xf32>
    %cst_9 = arith.constant 3.125000e-02 : f32
    %30 = vector.broadcast %cst_9 : f32 to vector<8x1xf32>
    %31 = arith.mulf %29, %30 : vector<8x1xf32>
    %cst_10 = arith.constant 0.899999976 : f32
    %32 = vector.broadcast %cst_10 : f32 to vector<8x1xf32>
    %33 = arith.mulf %32, %27 : vector<8x1xf32>
    %34 = arith.subf %20, %33 : vector<8x1xf32>
    %cst_11 = arith.constant 1.000000e-01 : f32
    %35 = vector.broadcast %cst_11 : f32 to vector<8x1xf32>
    %36 = arith.mulf %35, %31 : vector<8x1xf32>
    %37 = arith.subf %34, %36 : vector<8x1xf32>
    %cst_12 = arith.constant 0.000000e+00 : f32
    %38 = vector.broadcast %cst_12 : f32 to vector<8x1xf32>
    %39 = arith.select %7, %37, %38 : vector<8x1xi1>, vector<8x1xf32>
    %40 = vector.shape_cast %39 : vector<8x1xf32> to vector<1x8x1xf32>
    %cst_13 = arith.constant dense<0.000000e+00> : vector<1xf32>
    %41 = vector.multi_reduction <add>, %40, %cst_13 [1, 2] : vector<1x8x1xf32> to vector<1xf32>
    %42 = vector.shape_cast %41 : vector<1xf32> to vector<1x1x1xf32>
    %43 = vector.extract %42[0, 0, 0] : f32 from vector<1x1x1xf32>
    %44 = vector.broadcast %43 : f32 to vector<8x128xf32>
    %c0_14 = arith.constant 0 : index
    %c0_15 = arith.constant 0 : index
    %45 = vector.load %arg3[%c0_14, %c0_15] : memref<8x128xf32, #tpu.memory_space<vmem>>, vector<8x128xf32>
    tpu.vector_store %arg3[%c0_14, %c0_15], %44 {strides = array<i32>} : memref<8x128xf32, #tpu.memory_space<vmem>>, vector<8x128xf32>,
    return
  }
  func.func @transform_0(%arg0: i32) -> (i32, i32) {
    %c0_i32 = arith.constant 0 : i32
    %c0_i32_0 = arith.constant 0 : i32
    return %arg0, %c0_i32 : i32, i32
  }
  func.func @transform_1(%arg0: i32) -> (i32, i32) {
    %c0_i32 = arith.constant 0 : i32
    %c0_i32_0 = arith.constant 0 : i32
    return %arg0, %c0_i32 : i32, i32
  }
  func.func @transform_2(%arg0: i32) -> (i32, i32) {
    %c0_i32 = arith.constant 0 : i32
    %c0_i32_0 = arith.constant 0 : i32
    return %arg0, %c0_i32 : i32, i32
  }
}

</mosaic_0001>

<llo_original>
// kernel: tpu_custom_call.1
$region0: #{tpu_custom_call.1}
  #allocation0 [shape = 'u32[]', space=smem, size = 0x4, offset = 0x4, fixed_abs, tag = 'smem constant byte address 0x4 - core index']
  #allocation1 [shape = 'u32[144,128]{1,0:T(1,128)}', space=vmem, size = 0x12000, scoped, tag = 'internal scratch']
  %s0 = inlined_call_operand.vmem [shape: f32[8,32], index: 0, kind: input, shape index: {}]
  %s1 = inlined_call_operand.vmem [shape: s32[8,1], index: 1, kind: input, shape index: {}]
  %s2 = inlined_call_operand.hbm [shape: f32[8,128], index: 2, kind: output, shape index: {}]
  %s3 = sld [smem:[#allocation0]]
  $region18: #{tpu_custom_call.1} parent=0
    _
  %s5 = ssub.s32 1, %s3
  %s6 = scalar_select 0, %s5, %s3
  $region1: #{tpu_custom_call.1} parent=0
    #allocation2 [shape = 'u8[4096]{0}', space=vmem, size = 0x1000, scoped, tag = 'output window, operand 0, single buffered']
    #allocation3 [shape = 's32[1]{0}', space=sflag, size = 0x4, scoped, tag = 'scoped memory for tpu_custom_call.1']
    %7 = vsyncpa [#allocation3], 0
    // Predicated region
    $region2: #{tpu_custom_call.1} parent=1 // pred_check
      _
    $region3: #{tpu_custom_call.1} parent=1 // pred_check_branch
      %9 = sbr.rel (0) target = $region5
    $region4: #{tpu_custom_call.1} parent=1 // pred_region
      _
    $region5: #{tpu_custom_call.1} parent=1 // pred_fallthru
      _
    // Predicated region
    $region6: #{tpu_custom_call.1} parent=1 // pred_check
      _
    $region7: #{tpu_custom_call.1} parent=1 // pred_check_branch
      %11 = sbr.rel (0) target = $region9
    $region8: #{tpu_custom_call.1} parent=1 // pred_region
      _
    $region9: #{tpu_custom_call.1} parent=1 // pred_fallthru
      _
    %v12 = vld [vmem:[%s0] sm:$0xff]
    %v13 = vld [vmem:[%s1] sm:$0xff]
    %v14 = vlaneseq
    %v15 = vshrl.u32 %v14, 7
    %s16 = smul.u32 0, 8
    %v17 = vstv %s16
    %v18 = vadd.s32 %v17, %v15
    %vm19 = vcmp.lt.s32.totalorder %v18, 8
    %v20 = vsel %vm19, 1, 0
    %vm21 = vcmp.eq.s32.totalorder %v20, 1
    %v22 = vsel %vm21, %v12, 0.0
    %vm23 = vcmask 261120
    %v24 = vsel %vm23, %v22, -inf
    %25 = vmax.xlane.f32.xlu0 %v24
    %v26 = vpop.xlane.xlu0 %25
    %v27 = vsub.f32 %v22, %v26
    %v28 = vmul.f32 %v27, 1.442695
    %v29 = vpow.pop %v28
    %v30 = vsel %vm23, %v29, 0.0
    %31 = vadd.xlane.f32.xlu0 %v30
    %v32 = vpop.xlane.xlu0 %31
    %v33 = vlog2.pop %v32
    %v34 = vmul.f32 %v33, 0.6931472
    %v35 = vadd.f32 %v26, %v34
    %v36 = vlaneseq
    %v37 = vand.u32 %v36, 127
    %38 = vset.pattern.permute.xlu0 0
    %39 = vperm.xlu0 %38, %v13
    %v40 = vpop.permute.xlu0 %39
    %vm41 = vcmp.eq.s32.totalorder %v37, %v40
    %v42 = vsel %vm41, %v22, 0.0
    %v43 = vsel %vm23, %v42, 0.0
    %44 = vadd.xlane.f32.xlu0 %v43
    %v45 = vpop.xlane.xlu0 %44
    %v46 = vsel %vm23, %v22, 0.0
    %47 = vadd.xlane.f32.xlu0 %v46
    %v48 = vpop.xlane.xlu0 %47
    %v49 = vmul.f32 %v48, 0.03125
    %v50 = vmul.f32 %v45, 0.9
    %v51 = vsub.f32 %v35, %v50
    %v52 = vmul.f32 %v49, 0.1
    %v53 = vsub.f32 %v51, %v52
    %v54 = vsel %vm19, %v53, 0.0
    %vm55 = vcmask 7168
    %v56 = vsel %vm55, %v54, 0.0
    %57 = vadd.xlane.f32.xlu0 %v56
    %v58 = vpop.xlane.xlu0 %57
    %v59 = vrot.slane %v58, 4
    %v60 = vadd.f32 %v58, %v59
    %v61 = vrot.slane %v60, 2
    %v62 = vadd.f32 %v60, %v61
    %v63 = vrot.slane %v62, 1
    %v64 = vadd.f32 %v62, %v63
    %s65 = vtos %v64
    %v66 = vstv %s65
    %67 = vst [vmem:[#allocation2] sm:$0xff] %v66
    // Predicated region
    $region10: #{tpu_custom_call.1} parent=1 // pred_check
      _
    $region11: #{tpu_custom_call.1} parent=1 // pred_check_branch
      %69 = sbr.rel (0) target = $region13
    $region12: #{tpu_custom_call.1} parent=1 // pred_region
      %s71 = ssub.s32 128, 128
      %72 = vsyncadd [#allocation3], %s71
      %s74 = sshll.u32 [#allocation2], 4
      %s75 = int_to_ptr.vmem [resolvable:$true] %s74
      %77 = dma.vmem_to_hbm [thread:$0]  %s75, 128, %s2, [#allocation3]
    $region13: #{tpu_custom_call.1} parent=1 // pred_fallthru
      _
    // Predicated region
    $region14: #{tpu_custom_call.1} parent=1 // pred_check
      _
    $region15: #{tpu_custom_call.1} parent=1 // pred_check_branch
      %79 = sbr.rel (0) target = $region17
    $region16: #{tpu_custom_call.1} parent=1 // pred_region
      %80 = dma.done [#allocation3], 128
    $region17: #{tpu_custom_call.1} parent=1 // pred_fallthru
      _
    %81 = vsyncpa [#allocation3], 1

</llo_original>
